<compile_context>
chip_gen: v5e
topology: v5e:2x2
jax: 0.10.0
libtpu: 0.0.40
codegen_flags: <defaults>
</compile_context>

<pallas_src>
import jax
import jax.numpy as jnp
from jax import lax
from jax.experimental import pallas as pl
from jax.experimental.pallas import tpu as pltpu


def _round_up(v, m):
    return ((v + m - 1) // m) * m


def _vmem_limit_bytes(per_step_io_bytes):
    """Explicit scoped-VMEM budget: double-buffered I/O tiles + headroom,
    clamped below the physical VMEM of whatever chip we're tracing on."""
    want = 4 * per_step_io_bytes + (8 << 20)
    try:
        cap = pltpu.get_tpu_info().vmem_capacity_bytes
    except Exception:  # pragma: no cover - conservative fallback
        cap = 64 << 20
    return int(min(max(32 << 20, want), (cap * 3) // 4))


def _membership(wm, bm, x):
    """1x1-conv logits + softmax over the hyperedge (sublane) axis.

    wm: (He, C) io dtype, bm: (He, 1) f32, x: (C, TN) io dtype -> (He, TN) f32.
    """
    logits = jnp.dot(wm, x, preferred_element_type=jnp.float32) + bm
    logits = logits - jnp.max(logits, axis=0, keepdims=True)
    p = jnp.exp(logits)
    # Normalization on the EUP (approx reciprocal) frees a VALU slot.
    return p * pl.reciprocal(jnp.sum(p, axis=0, keepdims=True), approx=True)


def _resident_kernel(x_ref, wm_ref, bm_ref, wn_ref, bn_ref, o_ref):
    """Single grid step, whole batch resident in VMEM (v5e/v6e, small shapes).

    x_ref : (B, C, N) io dtype      wm_ref: (He, C)   bm_ref: (He, 1) f32
    wn_ref: (C, C)                  bn_ref: (C, 1) f32
    o_ref : (B, C, N) io dtype
    """
    wm = wm_ref[...]
    wn = wn_ref[...]
    bm = bm_ref[...]
    bn = bn_ref[...]
    for b in range(x_ref.shape[0]):        # B is small & static: unrolled in-body
        x = x_ref[b]                       # (C, N)
        m_lo = _membership(wm, bm, x).astype(x.dtype)
        # hyperedge_features = x @ m^T (contract over tokens).  Mosaic transposes
        # m_lo through the XLU; cheap at He<=16, audit if He ever reaches >=128.
        hf = lax.dot_general(x, m_lo, (((1,), (1,)), ((), ())),
                             preferred_element_type=jnp.float32)      # (C, He)
        x_upd = jnp.dot(hf.astype(x.dtype), m_lo,
                        preferred_element_type=jnp.float32)           # (C, N)
        x_tr = jnp.dot(wn, x, preferred_element_type=jnp.float32) + bn
        o_ref[b] = jnp.maximum(x_tr + x_upd, 0.0).astype(o_ref.dtype)


def _tiled_kernel(x_ref, wm_ref, bm_ref, wn_ref, bn_ref, o_ref, hf_ref):
    """Two-phase N-tiled path (v7x / production shapes).

    grid = (B, 2, N_tiles); phase 0 accumulates hf = x @ m^T into a (C, He)
    VMEM scratch across N tiles, phase 1 recomputes membership per tile and
    writes the output tile.
    """
    phase = pl.program_id(1)
    n = pl.program_id(2)

    x = x_ref[...]                                            # (C, TN)
    m_lo = _membership(wm_ref[...], bm_ref[...], x).astype(x.dtype)

    @pl.when(jnp.logical_and(phase == 0, n == 0))
    def _init():
        hf_ref[...] = jnp.zeros_like(hf_ref)

    @pl.when(phase == 0)
    def _accumulate():
        hf_ref[...] += lax.dot_general(x, m_lo, (((1,), (1,)), ((), ())),
                                       preferred_element_type=jnp.float32)

    @pl.when(phase == 1)
    def _emit():
        x_upd = jnp.dot(hf_ref[...].astype(x.dtype), m_lo,
                        preferred_element_type=jnp.float32)
        x_tr = (jnp.dot(wn_ref[...], x, preferred_element_type=jnp.float32)
                + bn_ref[...])
        o_ref[...] = jnp.maximum(x_tr + x_upd, 0.0).astype(o_ref.dtype)


def hypergraph_conv(x_nchw, w_membership, b_membership, w_node, b_node, *,
                    hyperedge_num, n_tile=None, io_dtype=jnp.bfloat16):
    """Forward pass of HypergraphConv.

    n_tile=None (default): single grid step, whole batch resident (v5e/v6e and
    any small/medium N).  n_tile=<multiple of 128>: two-phase N-tiled grid with
    batch marked "parallel" (v7x / large N where a full-N block would not fit
    the 64 MiB VMEM).
    """
    B, C, H, W = x_nchw.shape
    N = H * W
    He = hyperedge_num
    assert w_membership.shape == (He, C) and w_node.shape == (C, C)

    itemsize = jnp.dtype(io_dtype).itemsize
    sub = 16 if itemsize == 2 else 8          # sublane multiple for the io dtype
    Cp = _round_up(C, sub)
    Hep = _round_up(He, sub)

    lane = 128
    if n_tile is not None:
        n_tile = _round_up(int(n_tile), lane)
        Np = _round_up(N, n_tile)
    else:
        Np = _round_up(N, lane)

    # (B,C,H,W) -> (B,C,N) is a free reshape; pad channels/tokens with zeros
    # (zero channels/tokens contribute nothing to hf, and are sliced off below).
    x_bcn = x_nchw.reshape(B, C, N).astype(io_dtype)
    x_bcn = jnp.pad(x_bcn, ((0, 0), (0, Cp - C), (0, Np - N)))

    wm = jnp.pad(w_membership, ((0, Hep - He), (0, Cp - C))).astype(io_dtype)
    # Padded hyperedges get a huge negative bias -> exp() underflows to exactly
    # 0, so the softmax over real hyperedges is unchanged.
    bm = jnp.pad(b_membership.astype(jnp.float32), (0, Hep - He),
                 constant_values=-1e9).reshape(Hep, 1)
    wn = jnp.pad(w_node, ((0, Cp - C), (0, Cp - C))).astype(io_dtype)
    bn = jnp.pad(b_node.astype(jnp.float32), (0, Cp - C)).reshape(Cp, 1)

    weight_bytes = (wm.size + wn.size) * itemsize + (bm.size + bn.size) * 4

    if n_tile is None or n_tile >= Np:
        # ---- Resident path: one grid step, batch unrolled in-body ----------
        per_step_io = 2 * B * Cp * Np * itemsize
        cost = pl.CostEstimate(
            flops=int(2 * B * Np * (3 * Hep * Cp + Cp * Cp)),
            transcendentals=int(B * Hep * Np),
            bytes_accessed=int(per_step_io + weight_bytes))
        out_bcn = pl.pallas_call(
            _resident_kernel,
            out_shape=jax.ShapeDtypeStruct((B, Cp, Np), io_dtype),
            grid=(1,),
            in_specs=[
                pl.BlockSpec((B, Cp, Np), lambda i: (0, 0, 0)),
                pl.BlockSpec((Hep, Cp), lambda i: (0, 0)),
                pl.BlockSpec((Hep, 1), lambda i: (0, 0)),
                pl.BlockSpec((Cp, Cp), lambda i: (0, 0)),
                pl.BlockSpec((Cp, 1), lambda i: (0, 0)),
            ],
            out_specs=pl.BlockSpec((B, Cp, Np), lambda i: (0, 0, 0)),
            compiler_params=pltpu.CompilerParams(
                dimension_semantics=("arbitrary",),
                vmem_limit_bytes=_vmem_limit_bytes(per_step_io)),
            cost_estimate=cost,
        )(x_bcn, wm, bm, wn, bn)
    else:
        # ---- Two-phase N-tiled path (batch parallel across TensorCores) ----
        nt = Np // n_tile
        per_step_io = 2 * Cp * n_tile * itemsize
        cost = pl.CostEstimate(
            flops=int(2 * B * Np * (4 * Hep * Cp + Cp * Cp)),
            transcendentals=int(2 * B * Hep * Np),
            bytes_accessed=int(3 * B * Cp * Np * itemsize + weight_bytes))
        out_bcn = pl.pallas_call(
            _tiled_kernel,
            out_shape=jax.ShapeDtypeStruct((B, Cp, Np), io_dtype),
            grid=(B, 2, nt),
            in_specs=[
                pl.BlockSpec((None, Cp, n_tile), lambda b, ph, n: (b, 0, n)),
                pl.BlockSpec((Hep, Cp), lambda b, ph, n: (0, 0)),   # resident weights
                pl.BlockSpec((Hep, 1), lambda b, ph, n: (0, 0)),
                pl.BlockSpec((Cp, Cp), lambda b, ph, n: (0, 0)),
                pl.BlockSpec((Cp, 1), lambda b, ph, n: (0, 0)),
            ],
            # Phase 0 pins the output block index to tile 0 (never written, so
            # nothing uninitialized reaches HBM); phase 1 writes each tile once.
            out_specs=pl.BlockSpec((None, Cp, n_tile),
                                   lambda b, ph, n: (b, 0, ph * n)),
            scratch_shapes=[pltpu.VMEM((Cp, Hep), jnp.float32)],
            compiler_params=pltpu.CompilerParams(
                dimension_semantics=("parallel", "arbitrary", "arbitrary"),
                vmem_limit_bytes=_vmem_limit_bytes(per_step_io)),
            cost_estimate=cost,
        )(x_bcn, wm, bm, wn, bn)

    # Slice off channel/token padding; (B, C, N) -> (B, C, H, W) is free.
    return out_bcn[:, :C, :N].reshape(B, C, H, W)


def _reference(x_nchw, wm, bm, wn, bn):
    """Pure-JAX f32 reference mirroring the torch forward."""
    B, C, H, W = x_nchw.shape
    N = H * W
    x_flat = x_nchw.reshape(B, C, N)
    m = jnp.einsum('ec,bcn->ben', wm, x_flat) + bm[None, :, None]
    m = jax.nn.softmax(m, axis=1)
    hf = jnp.einsum('bcn,ben->bce', x_flat, m)
    x_upd = jnp.einsum('bce,ben->bcn', hf, m)
    x_tr = jnp.einsum('oc,bcn->bon', wn, x_flat) + bn[None, :, None]
    return jnp.maximum(x_tr + x_upd, 0.0).reshape(B, C, H, W)


if __name__ == "__main__":
    # Shapes consistent with the module: in_channels=4, hyperedge_num=8,
    # spatial 16x16, batch 2.
    B, C, H, W = 2, 4, 16, 16
    hyperedge_num = 8

    key = jax.random.PRNGKey(0)
    k1, k2, k3, k4, k5 = jax.random.split(key, 5)
    x = jax.random.normal(k1, (B, C, H, W), dtype=jnp.float32)
    # Torch Conv 1x1 weights with trailing kernel dims squeezed: (Cout, Cin).
    w_membership = 0.1 * jax.random.normal(k2, (hyperedge_num, C), dtype=jnp.float32)
    b_membership = 0.1 * jax.random.normal(k3, (hyperedge_num,), dtype=jnp.float32)
    w_node = 0.1 * jax.random.normal(k4, (C, C), dtype=jnp.float32)
    b_node = 0.1 * jax.random.normal(k5, (C,), dtype=jnp.float32)

    # Reference on bf16-rounded inputs (the kernel's I/O dtype) so the check
    # isolates kernel structure from input quantization; biases stay f32.
    rnd = lambda a: a.astype(jnp.bfloat16).astype(jnp.float32)
    ref = jax.block_until_ready(
        _reference(rnd(x), rnd(w_membership), b_membership, rnd(w_node), b_node))
    tol = 3e-2 * (1.0 + float(jnp.max(jnp.abs(ref))))

    # Path 1: collapsed grid, whole batch resident (v5e/v6e-friendly default).
    out_res = hypergraph_conv(x, w_membership, b_membership, w_node, b_node,
                              hyperedge_num=hyperedge_num)
    out_res = jax.block_until_ready(out_res)
    assert out_res.shape == (B, C, H, W)
    err = float(jnp.max(jnp.abs(out_res.astype(jnp.float32) - ref)))
    assert err < tol, f"resident path mismatch: {err} >= {tol}"

    # Path 2: two-phase N-tiled grid (v7x / production-shape structure),
    # exercised here with a small 128-lane tile to prove it runs.
    out_tiled = hypergraph_conv(x, w_membership, b_membership, w_node, b_node,
                                hyperedge_num=hyperedge_num, n_tile=128)
    out_tiled = jax.block_until_ready(out_tiled)
    assert out_tiled.shape == (B, C, H, W)
    err = float(jnp.max(jnp.abs(out_tiled.astype(jnp.float32) - ref)))
    assert err < tol, f"tiled path mismatch: {err} >= {tol}"

    print("KERNEL_OK")
</pallas_src>

<mosaic_0001>
module attributes {stable_mosaic.version = 11 : i64} {
  func.func @_resident_kernel(%arg0: i32, %arg1: memref<2x16x256xbf16, #tpu.memory_space<vmem>>, %arg2: memref<16x16xbf16, #tpu.memory_space<vmem>>, %arg3: memref<16x1xf32, #tpu.memory_space<vmem>>, %arg4: memref<16x16xbf16, #tpu.memory_space<vmem>>, %arg5: memref<16x1xf32, #tpu.memory_space<vmem>>, %arg6: memref<2x16x256xbf16, #tpu.memory_space<vmem>>) attributes {dimension_semantics = [#tpu.dimension_semantics<arbitrary>], iteration_bounds = array<i64: 1>, scalar_prefetch = 0 : i64, scratch_operands = 0 : i64, tpu.core_type = #tpu.core_type<tc>, window_params = [{pipeline_mode = #tpu.pipeline_mode<synchronous>, transform_indices = @transform_0, window_bounds = array<i64: 2, 16, 256>}, {pipeline_mode = #tpu.pipeline_mode<synchronous>, transform_indices = @transform_1, window_bounds = array<i64: 16, 16>}, {pipeline_mode = #tpu.pipeline_mode<synchronous>, transform_indices = @transform_2, window_bounds = array<i64: 16, 1>}, {pipeline_mode = #tpu.pipeline_mode<synchronous>, transform_indices = @transform_3, window_bounds = array<i64: 16, 16>}, {pipeline_mode = #tpu.pipeline_mode<synchronous>, transform_indices = @transform_4, window_bounds = array<i64: 16, 1>}, {pipeline_mode = #tpu.pipeline_mode<synchronous>, transform_indices = @transform_5, window_bounds = array<i64: 2, 16, 256>}]} {
    %c0 = arith.constant 0 : index
    %c0_0 = arith.constant 0 : index
    %0 = vector.load %arg2[%c0, %c0_0] : memref<16x16xbf16, #tpu.memory_space<vmem>>, vector<16x16xbf16>
    %c0_1 = arith.constant 0 : index
    %c0_2 = arith.constant 0 : index
    %1 = vector.load %arg4[%c0_1, %c0_2] : memref<16x16xbf16, #tpu.memory_space<vmem>>, vector<16x16xbf16>
    %c0_3 = arith.constant 0 : index
    %c0_4 = arith.constant 0 : index
    %2 = vector.load %arg3[%c0_3, %c0_4] : memref<16x1xf32, #tpu.memory_space<vmem>>, vector<16x1xf32>
    %c0_5 = arith.constant 0 : index
    %c0_6 = arith.constant 0 : index
    %3 = vector.load %arg5[%c0_5, %c0_6] : memref<16x1xf32, #tpu.memory_space<vmem>>, vector<16x1xf32>
    %c0_7 = arith.constant 0 : index
    %c0_8 = arith.constant 0 : index
    %c0_9 = arith.constant 0 : index
    %4 = vector.load %arg1[%c0_7, %c0_8, %c0_9] : memref<2x16x256xbf16, #tpu.memory_space<vmem>>, vector<1x16x256xbf16>
    %5 = vector.shape_cast %4 : vector<1x16x256xbf16> to vector<16x256xbf16>
    %cst = arith.constant dense<0.000000e+00> : vector<16x256xf32>
    %6 = tpu.matmul %0, %5, %cst {dimension_numbers = #tpu.dot_dimension_numbers<[1], [0], [0], [1], [0, 0, 1, 1], [], []>} : vector<16x16xbf16>, vector<16x256xbf16>, vector<16x256xf32> -> vector<16x256xf32>
    %7 = vector.broadcast %2 : vector<16x1xf32> to vector<16x256xf32>
    %8 = arith.addf %6, %7 : vector<16x256xf32>
    %cst_10 = arith.constant dense<0xFF800000> : vector<256xf32>
    %9 = vector.multi_reduction <maximumf>, %8, %cst_10 [0] : vector<16x256xf32> to vector<256xf32>
    %10 = vector.shape_cast %9 : vector<256xf32> to vector<1x256xf32>
    %11 = vector.broadcast %10 : vector<1x256xf32> to vector<16x256xf32>
    %12 = arith.subf %8, %11 : vector<16x256xf32>
    %13 = math.exp %12 : vector<16x256xf32>
    %cst_11 = arith.constant dense<0.000000e+00> : vector<256xf32>
    %14 = vector.multi_reduction <add>, %13, %cst_11 [0] : vector<16x256xf32> to vector<256xf32>
    %15 = vector.shape_cast %14 : vector<256xf32> to vector<1x256xf32>
    %16 = tpu.reciprocal %15 {approx = true} : vector<1x256xf32> -> vector<1x256xf32>
    %17 = vector.broadcast %16 : vector<1x256xf32> to vector<16x256xf32>
    %18 = arith.mulf %13, %17 : vector<16x256xf32>
    %19 = arith.truncf %18 : vector<16x256xf32> to vector<16x256xbf16>
    %cst_12 = arith.constant dense<0.000000e+00> : vector<16x16xf32>
    %20 = tpu.matmul %5, %19, %cst_12 {dimension_numbers = #tpu.dot_dimension_numbers<[1], [1], [0], [0], [0, 0, 1, 0], [], []>} : vector<16x256xbf16>, vector<16x256xbf16>, vector<16x16xf32> -> vector<16x16xf32>
    %21 = arith.truncf %20 : vector<16x16xf32> to vector<16x16xbf16>
    %cst_13 = arith.constant dense<0.000000e+00> : vector<16x256xf32>
    %22 = tpu.matmul %21, %19, %cst_13 {dimension_numbers = #tpu.dot_dimension_numbers<[1], [0], [0], [1], [0, 0, 1, 1], [], []>} : vector<16x16xbf16>, vector<16x256xbf16>, vector<16x256xf32> -> vector<16x256xf32>
    %cst_14 = arith.constant dense<0.000000e+00> : vector<16x256xf32>
    %23 = tpu.matmul %1, %5, %cst_14 {dimension_numbers = #tpu.dot_dimension_numbers<[1], [0], [0], [1], [0, 0, 1, 1], [], []>} : vector<16x16xbf16>, vector<16x256xbf16>, vector<16x256xf32> -> vector<16x256xf32>
    %24 = vector.broadcast %3 : vector<16x1xf32> to vector<16x256xf32>
    %25 = arith.addf %23, %24 : vector<16x256xf32>
    %26 = arith.addf %25, %22 : vector<16x256xf32>
    %cst_15 = arith.constant 0.000000e+00 : f32
    %27 = vector.broadcast %cst_15 : f32 to vector<16x256xf32>
    %28 = arith.maximumf %26, %27 : vector<16x256xf32>
    %29 = arith.truncf %28 : vector<16x256xf32> to vector<16x256xbf16>
    %c0_16 = arith.constant 0 : index
    %c0_17 = arith.constant 0 : index
    %c0_18 = arith.constant 0 : index
    %30 = vector.load %arg6[%c0_16, %c0_17, %c0_18] : memref<2x16x256xbf16, #tpu.memory_space<vmem>>, vector<1x16x256xbf16>
    %31 = vector.shape_cast %30 : vector<1x16x256xbf16> to vector<16x256xbf16>
    %32 = vector.shape_cast %29 : vector<16x256xbf16> to vector<1x16x256xbf16>
    tpu.vector_store %arg6[%c0_16, %c0_17, %c0_18], %32 {strides = array<i32>} : memref<2x16x256xbf16, #tpu.memory_space<vmem>>, vector<1x16x256xbf16>,
    %c1 = arith.constant 1 : index
    %c0_19 = arith.constant 0 : index
    %c0_20 = arith.constant 0 : index
    %33 = vector.load %arg1[%c1, %c0_19, %c0_20] : memref<2x16x256xbf16, #tpu.memory_space<vmem>>, vector<1x16x256xbf16>
    %34 = vector.shape_cast %33 : vector<1x16x256xbf16> to vector<16x256xbf16>
    %cst_21 = arith.constant dense<0.000000e+00> : vector<16x256xf32>
    %35 = tpu.matmul %0, %34, %cst_21 {dimension_numbers = #tpu.dot_dimension_numbers<[1], [0], [0], [1], [0, 0, 1, 1], [], []>} : vector<16x16xbf16>, vector<16x256xbf16>, vector<16x256xf32> -> vector<16x256xf32>
    %36 = vector.broadcast %2 : vector<16x1xf32> to vector<16x256xf32>
    %37 = arith.addf %35, %36 : vector<16x256xf32>
    %cst_22 = arith.constant dense<0xFF800000> : vector<256xf32>
    %38 = vector.multi_reduction <maximumf>, %37, %cst_22 [0] : vector<16x256xf32> to vector<256xf32>
    %39 = vector.shape_cast %38 : vector<256xf32> to vector<1x256xf32>
    %40 = vector.broadcast %39 : vector<1x256xf32> to vector<16x256xf32>
    %41 = arith.subf %37, %40 : vector<16x256xf32>
    %42 = math.exp %41 : vector<16x256xf32>
    %cst_23 = arith.constant dense<0.000000e+00> : vector<256xf32>
    %43 = vector.multi_reduction <add>, %42, %cst_23 [0] : vector<16x256xf32> to vector<256xf32>
    %44 = vector.shape_cast %43 : vector<256xf32> to vector<1x256xf32>
    %45 = tpu.reciprocal %44 {approx = true} : vector<1x256xf32> -> vector<1x256xf32>
    %46 = vector.broadcast %45 : vector<1x256xf32> to vector<16x256xf32>
    %47 = arith.mulf %42, %46 : vector<16x256xf32>
    %48 = arith.truncf %47 : vector<16x256xf32> to vector<16x256xbf16>
    %cst_24 = arith.constant dense<0.000000e+00> : vector<16x16xf32>
    %49 = tpu.matmul %34, %48, %cst_24 {dimension_numbers = #tpu.dot_dimension_numbers<[1], [1], [0], [0], [0, 0, 1, 0], [], []>} : vector<16x256xbf16>, vector<16x256xbf16>, vector<16x16xf32> -> vector<16x16xf32>
    %50 = arith.truncf %49 : vector<16x16xf32> to vector<16x16xbf16>
    %cst_25 = arith.constant dense<0.000000e+00> : vector<16x256xf32>
    %51 = tpu.matmul %50, %48, %cst_25 {dimension_numbers = #tpu.dot_dimension_numbers<[1], [0], [0], [1], [0, 0, 1, 1], [], []>} : vector<16x16xbf16>, vector<16x256xbf16>, vector<16x256xf32> -> vector<16x256xf32>
    %cst_26 = arith.constant dense<0.000000e+00> : vector<16x256xf32>
    %52 = tpu.matmul %1, %34, %cst_26 {dimension_numbers = #tpu.dot_dimension_numbers<[1], [0], [0], [1], [0, 0, 1, 1], [], []>} : vector<16x16xbf16>, vector<16x256xbf16>, vector<16x256xf32> -> vector<16x256xf32>
    %53 = vector.broadcast %3 : vector<16x1xf32> to vector<16x256xf32>
    %54 = arith.addf %52, %53 : vector<16x256xf32>
    %55 = arith.addf %54, %51 : vector<16x256xf32>
    %cst_27 = arith.constant 0.000000e+00 : f32
    %56 = vector.broadcast %cst_27 : f32 to vector<16x256xf32>
    %57 = arith.maximumf %55, %56 : vector<16x256xf32>
    %58 = arith.truncf %57 : vector<16x256xf32> to vector<16x256xbf16>
    %c1_28 = arith.constant 1 : index
    %c0_29 = arith.constant 0 : index
    %c0_30 = arith.constant 0 : index
    %59 = vector.load %arg6[%c1_28, %c0_29, %c0_30] : memref<2x16x256xbf16, #tpu.memory_space<vmem>>, vector<1x16x256xbf16>
    %60 = vector.shape_cast %59 : vector<1x16x256xbf16> to vector<16x256xbf16>
    %61 = vector.shape_cast %58 : vector<16x256xbf16> to vector<1x16x256xbf16>
    tpu.vector_store %arg6[%c1_28, %c0_29, %c0_30], %61 {strides = array<i32>} : memref<2x16x256xbf16, #tpu.memory_space<vmem>>, vector<1x16x256xbf16>,
    return
  }
  func.func @transform_0(%arg0: i32) -> (i32, i32, i32) {
    %c0_i32 = arith.constant 0 : i32
    %c0_i32_0 = arith.constant 0 : i32
    %c0_i32_1 = arith.constant 0 : i32
    %c0_i32_2 = arith.constant 0 : i32
    return %c0_i32, %c0_i32_0, %c0_i32_1 : i32, i32, i32
  }
  func.func @transform_1(%arg0: i32) -> (i32, i32) {
    %c0_i32 = arith.constant 0 : i32
    %c0_i32_0 = arith.constant 0 : i32
    %c0_i32_1 = arith.constant 0 : i32
    return %c0_i32, %c0_i32_0 : i32, i32
  }
  func.func @transform_2(%arg0: i32) -> (i32, i32) {
    %c0_i32 = arith.constant 0 : i32
    %c0_i32_0 = arith.constant 0 : i32
    %c0_i32_1 = arith.constant 0 : i32
    return %c0_i32, %c0_i32_0 : i32, i32
  }
  func.func @transform_3(%arg0: i32) -> (i32, i32) {
    %c0_i32 = arith.constant 0 : i32
    %c0_i32_0 = arith.constant 0 : i32
    %c0_i32_1 = arith.constant 0 : i32
    return %c0_i32, %c0_i32_0 : i32, i32
  }
  func.func @transform_4(%arg0: i32) -> (i32, i32) {
    %c0_i32 = arith.constant 0 : i32
    %c0_i32_0 = arith.constant 0 : i32
    %c0_i32_1 = arith.constant 0 : i32
    return %c0_i32, %c0_i32_0 : i32, i32
  }
  func.func @transform_5(%arg0: i32) -> (i32, i32, i32) {
    %c0_i32 = arith.constant 0 : i32
    %c0_i32_0 = arith.constant 0 : i32
    %c0_i32_1 = arith.constant 0 : i32
    %c0_i32_2 = arith.constant 0 : i32
    return %c0_i32, %c0_i32_0, %c0_i32_1 : i32, i32, i32
  }
}

</mosaic_0001>

<llo_original>
// kernel: tpu_custom_call.1
$region0: #{tpu_custom_call.1}
  #allocation0 [shape = 'u32[]', space=smem, size = 0x4, offset = 0x4, fixed_abs, tag = 'smem constant byte address 0x4 - core index']
  #allocation1 [shape = 'u32[72,128]{1,0:T(1,128)}', space=vmem, size = 0x9000, scoped, tag = 'internal scratch']
  %s0 = inlined_call_operand.vmem [shape: bf16[2,16,256], index: 0, kind: input, shape index: {}]
  %s1 = inlined_call_operand.hbm [shape: bf16[16,16], index: 1, kind: input, shape index: {}]
  %s2 = inlined_call_operand.vmem [shape: f32[16,1], index: 2, kind: input, shape index: {}]
  %s3 = inlined_call_operand.hbm [shape: bf16[16,16], index: 3, kind: input, shape index: {}]
  %s4 = inlined_call_operand.vmem [shape: f32[16,1], index: 4, kind: input, shape index: {}]
  %s5 = inlined_call_operand.hbm [shape: bf16[2,16,256], index: 5, kind: output, shape index: {}]
  %s6 = sld [smem:[#allocation0]]
  $region38: #{tpu_custom_call.1} parent=0
    _
  %s8 = ssub.s32 1, %s6
  %s9 = scalar_select 0, %s8, %s6
  $region1: #{tpu_custom_call.1} parent=0
    #allocation2 [shape = 'u8[4096]{0}', space=vmem, size = 0x1000, scoped, tag = 'input window, operand 1, single buffered']
    #allocation3 [shape = 's32[1]{0}', space=sflag, size = 0x4, scoped, tag = 'scoped memory for tpu_custom_call.1']
    #allocation4 [shape = 's32[1]{0}', space=sflag, size = 0x4, scoped, tag = 'scoped memory for tpu_custom_call.1']
    #allocation5 [shape = 'u8[4096]{0}', space=vmem, size = 0x1000, scoped, tag = 'input window, operand 3, single buffered']
    #allocation6 [shape = 's32[1]{0}', space=sflag, size = 0x4, scoped, tag = 'scoped memory for tpu_custom_call.1']
    #allocation7 [shape = 'u8[16384]{0}', space=vmem, size = 0x4000, scoped, tag = 'output window, operand 0, single buffered']
    %10 = vsyncpa [#allocation3], 0
    %11 = vsyncpa [#allocation6], 0
    %12 = vsyncpa [#allocation4], 0
    // Predicated region
    $region2: #{tpu_custom_call.1} parent=1 // pred_check
      _
    $region3: #{tpu_custom_call.1} parent=1 // pred_check_branch
      %14 = sbr.rel (0) target = $region5
    $region4: #{tpu_custom_call.1} parent=1 // pred_region
      _
    $region5: #{tpu_custom_call.1} parent=1 // pred_fallthru
      _
    // Predicated region
    $region6: #{tpu_custom_call.1} parent=1 // pred_check
      _
    $region7: #{tpu_custom_call.1} parent=1 // pred_check_branch
      %16 = sbr.rel (0) target = $region9
    $region8: #{tpu_custom_call.1} parent=1 // pred_region
      %18 = vsyncadd [#allocation3], 0
      %s19 = sshll.u32 %s1, 4
      %s20 = int_to_ptr.hbm [resolvable:$true] %s19
      %s21 = sshll.u32 [#allocation2], 4
      %s22 = int_to_ptr.vmem [resolvable:$true] %s21
      %27 = dma.hbm_to_vmem [thread:$0]  %s20, 128, %s22, [#allocation3], 64, 64, 4
    $region9: #{tpu_custom_call.1} parent=1 // pred_fallthru
      _
    // Predicated region
    $region10: #{tpu_custom_call.1} parent=1 // pred_check
      _
    $region11: #{tpu_custom_call.1} parent=1 // pred_check_branch
      %29 = sbr.rel (0) target = $region13
    $region12: #{tpu_custom_call.1} parent=1 // pred_region
      _
    $region13: #{tpu_custom_call.1} parent=1 // pred_fallthru
      _
    // Predicated region
    $region14: #{tpu_custom_call.1} parent=1 // pred_check
      _
    $region15: #{tpu_custom_call.1} parent=1 // pred_check_branch
      %31 = sbr.rel (0) target = $region17
    $region16: #{tpu_custom_call.1} parent=1 // pred_region
      %33 = vsyncadd [#allocation6], 0
      %s34 = sshll.u32 %s3, 4
      %s35 = int_to_ptr.hbm [resolvable:$true] %s34
      %s36 = sshll.u32 [#allocation5], 4
      %s37 = int_to_ptr.vmem [resolvable:$true] %s36
      %42 = dma.hbm_to_vmem [thread:$0]  %s35, 128, %s37, [#allocation6], 64, 64, 4
    $region17: #{tpu_custom_call.1} parent=1 // pred_fallthru
      _
    // Predicated region
    $region18: #{tpu_custom_call.1} parent=1 // pred_check
      _
    $region19: #{tpu_custom_call.1} parent=1 // pred_check_branch
      %44 = sbr.rel (0) target = $region21
    $region20: #{tpu_custom_call.1} parent=1 // pred_region
      _
    $region21: #{tpu_custom_call.1} parent=1 // pred_fallthru
      _
    // Predicated region
    $region22: #{tpu_custom_call.1} parent=1 // pred_check
      _
    $region23: #{tpu_custom_call.1} parent=1 // pred_check_branch
      %46 = sbr.rel (0) target = $region25
    $region24: #{tpu_custom_call.1} parent=1 // pred_region
      %48 = dma.done [#allocation3], 128
    $region25: #{tpu_custom_call.1} parent=1 // pred_fallthru
      _
    // Predicated region
    $region26: #{tpu_custom_call.1} parent=1 // pred_check
      _
    $region27: #{tpu_custom_call.1} parent=1 // pred_check_branch
      %50 = sbr.rel (0) target = $region29
    $region28: #{tpu_custom_call.1} parent=1 // pred_region
      %52 = dma.done [#allocation6], 128
    $region29: #{tpu_custom_call.1} parent=1 // pred_fallthru
      _
    %v54 = vld [vmem:[#allocation2] sm:$0xf]
    %v55 = vld [vmem:[#allocation2 + $0x4] sm:$0xf]
    %v56 = vld [vmem:[#allocation5] sm:$0xf]
    %v57 = vld [vmem:[#allocation5 + $0x4] sm:$0xf]
    %v58 = vld [vmem:[%s2] sm:$0xff]
    %v59 = vld [vmem:[%s2 + $0x8] sm:$0xff]
    %v60 = vld [vmem:[%s4] sm:$0xff]
    %v61 = vld [vmem:[%s4 + $0x8] sm:$0xff]
    %v62 = vld [vmem:[%s0] sm:$0xff]
    %v63 = vld [vmem:[%s0 + $0x8] sm:$0xff]
    %65 = vset.pattern.permute.xlu0 0
    %66 = vperm.xlu0 %65, %v58
    %v67 = vpop.permute.xlu0 %66
    %70 = vset.pattern.permute.xlu0 0
    %71 = vperm.xlu0 %70, %v59
    %v72 = vpop.permute.xlu0 %71
    %v76 = vunpack.c.l.b16 %v54
    %v77 = vunpack.c.l.b16 %v55
    %v78 = vpack.c.b16 %v77, %v76
    %v81 = vunpack.c.l.b16 %v62
    %v82 = vunpack.c.h.b16 %v62
    %v83 = vunpack.c.l.b16 %v63
    %v84 = vunpack.c.h.b16 %v63
    %v85 = vpack.c.b16 %v83, %v81
    %v86 = vpack.c.b16 %v84, %v82
    %vm89 = vcmask 130048
    %v91 = vsel %vm89, %v78, 0
    %93 = vmatpush.bf16.msra.mxu0 0
    %94 = vmatpush.bf16.msra.mxu0 0
    %95 = vmatpush.bf16.msra.mxu0 0
    %96 = vmatpush.bf16.msra.mxu0 0
    %97 = vmatpush.bf16.msra.mxu0 0
    %98 = vmatpush.bf16.msra.mxu0 0
    %99 = vmatpush.bf16.msra.mxu0 0
    %100 = vmatpush.bf16.msra.mxu0 %v85
    %101 = vmatmul.bf16.gmra.mxu0 %v91
    %v102 = vpop.f32.mrf.mxu0
    %v103 = vadd.f32 %v67, %v102
    %v104 = vpop.f32.mrf.mxu0
    %v105 = vadd.f32 %v72, %v104
    %106 = vdwg.mxu0
    %107 = vmatpush.bf16.msra.mxu0 0
    %108 = vmatpush.bf16.msra.mxu0 0
    %109 = vmatpush.bf16.msra.mxu0 0
    %110 = vmatpush.bf16.msra.mxu0 0
    %111 = vmatpush.bf16.msra.mxu0 0
    %112 = vmatpush.bf16.msra.mxu0 0
    %113 = vmatpush.bf16.msra.mxu0 0
    %114 = vmatpush.bf16.msra.mxu0 %v86
    %115 = vmatmul.bf16.gmra.mxu0 %v91
    %v116 = vpop.f32.mrf.mxu0
    %v117 = vadd.f32 %v67, %v116
    %v118 = vpop.f32.mrf.mxu0
    %v119 = vadd.f32 %v72, %v118
    %120 = vdwg.mxu0
    %v121 = vmax.f32 %v103, %v105
    %v122 = vrot.slane %v121, 4
    %v123 = vmax.f32 %v121, %v122
    %v124 = vrot.slane %v123, 2
    %v125 = vmax.f32 %v123, %v124
    %v126 = vrot.slane %v125, 1
    %v127 = vmax.f32 %v125, %v126
    %v128 = vmax.f32 %v117, %v119
    %v129 = vrot.slane %v128, 4
    %v130 = vmax.f32 %v128, %v129
    %v131 = vrot.slane %v130, 2
    %v132 = vmax.f32 %v130, %v131
    %v133 = vrot.slane %v132, 1
    %v134 = vmax.f32 %v132, %v133
    %v135 = vsub.f32 %v103, %v127
    %v136 = vsub.f32 %v117, %v134
    %v137 = vsub.f32 %v105, %v127
    %v138 = vsub.f32 %v119, %v134
    %v139 = vmul.f32 %v135, 1.442695
    %v140 = vpow.pop %v139
    %v141 = vmul.f32 %v136, 1.442695
    %v142 = vpow.pop %v141
    %v143 = vmul.f32 %v137, 1.442695
    %v144 = vpow.pop %v143
    %v145 = vmul.f32 %v138, 1.442695
    %v146 = vpow.pop %v145
    %v147 = vadd.f32 %v140, %v144
    %v148 = vrot.slane %v147, 4
    %v149 = vadd.f32 %v147, %v148
    %v150 = vrot.slane %v149, 2
    %v151 = vadd.f32 %v149, %v150
    %v152 = vrot.slane %v151, 1
    %v153 = vadd.f32 %v151, %v152
    %v154 = vadd.f32 %v142, %v146
    %v155 = vrot.slane %v154, 4
    %v156 = vadd.f32 %v154, %v155
    %v157 = vrot.slane %v156, 2
    %v158 = vadd.f32 %v156, %v157
    %v159 = vrot.slane %v158, 1
    %v160 = vadd.f32 %v158, %v159
    %v161 = vrcp.pop %v153
    %v162 = vrcp.pop %v160
    %v163 = vmul.f32 %v140, %v161
    %v164 = vmul.f32 %v142, %v162
    %v165 = vmul.f32 %v144, %v161
    %v166 = vmul.f32 %v146, %v162
    %v167 = vpack.c.bf16 %v165, %v163
    %v168 = vpack.c.bf16 %v166, %v164
    %169 = vmatpush.bf16.xpose.msra.mxu0 0
    %170 = vmatpush.bf16.xpose.msra.mxu0 0
    %171 = vmatpush.bf16.xpose.msra.mxu0 0
    %172 = vmatpush.bf16.xpose.msra.mxu0 0
    %173 = vmatpush.bf16.xpose.msra.mxu0 0
    %174 = vmatpush.bf16.xpose.msra.mxu0 0
    %175 = vmatpush.bf16.xpose.msra.mxu0 0
    %176 = vmatpush.bf16.xpose.msra.mxu0 %v167
    %177 = vmatmul.bf16.gmra.mxu0 %v85
    %v178 = vpop.f32.mrf.mxu0
    %v179 = vadd.f32 0.0, %v178
    %v180 = vpop.f32.mrf.mxu0
    %v181 = vadd.f32 0.0, %v180
    %182 = vdwg.mxu0
    %183 = vmatpush.bf16.xpose.msra.mxu0 0
    %184 = vmatpush.bf16.xpose.msra.mxu0 0
    %185 = vmatpush.bf16.xpose.msra.mxu0 0
    %186 = vmatpush.bf16.xpose.msra.mxu0 0
    %187 = vmatpush.bf16.xpose.msra.mxu0 0
    %188 = vmatpush.bf16.xpose.msra.mxu0 0
    %189 = vmatpush.bf16.xpose.msra.mxu0 0
    %190 = vmatpush.bf16.xpose.msra.mxu0 %v168
    %191 = vmatmul.bf16.gmra.mxu0 %v86
    %v192 = vpop.f32.mrf.mxu0
    %v193 = vadd.f32 %v179, %v192
    %v194 = vpop.f32.mrf.mxu0
    %v195 = vadd.f32 %v181, %v194
    %196 = vdwg.mxu0
    %v197 = vpack.c.bf16 %v195, %v193
    %v199 = vsel %vm89, %v197, 0
    %201 = vmatpush.bf16.msra.mxu0 0
    %202 = vmatpush.bf16.msra.mxu0 0
    %203 = vmatpush.bf16.msra.mxu0 0
    %204 = vmatpush.bf16.msra.mxu0 0
    %205 = vmatpush.bf16.msra.mxu0 0
    %206 = vmatpush.bf16.msra.mxu0 0
    %207 = vmatpush.bf16.msra.mxu0 0
    %208 = vmatpush.bf16.msra.mxu0 %v167
    %209 = vmatmul.bf16.gmra.mxu0 %v199
    %v210 = vpop.f32.mrf.mxu0
    %v211 = vadd.f32 0.0, %v210
    %v212 = vpop.f32.mrf.mxu0
    %v213 = vadd.f32 0.0, %v212
    %214 = vdwg.mxu0
    %215 = vmatpush.bf16.msra.mxu0 0
    %216 = vmatpush.bf16.msra.mxu0 0
    %217 = vmatpush.bf16.msra.mxu0 0
    %218 = vmatpush.bf16.msra.mxu0 0
    %219 = vmatpush.bf16.msra.mxu0 0
    %220 = vmatpush.bf16.msra.mxu0 0
    %221 = vmatpush.bf16.msra.mxu0 0
    %222 = vmatpush.bf16.msra.mxu0 %v168
    %223 = vmatmul.bf16.gmra.mxu0 %v199
    %v224 = vpop.f32.mrf.mxu0
    %v225 = vadd.f32 0.0, %v224
    %v226 = vpop.f32.mrf.mxu0
    %v227 = vadd.f32 0.0, %v226
    %228 = vdwg.mxu0
    %230 = vset.pattern.permute.xlu0 0
    %231 = vperm.xlu0 %230, %v60
    %v232 = vpop.permute.xlu0 %231
    %235 = vset.pattern.permute.xlu0 0
    %236 = vperm.xlu0 %235, %v61
    %v237 = vpop.permute.xlu0 %236
    %v241 = vunpack.c.l.b16 %v56
    %v242 = vunpack.c.l.b16 %v57
    %v243 = vpack.c.b16 %v242, %v241
    %v245 = vsel %vm89, %v243, 0
    %247 = vmatpush.bf16.msra.mxu0 0
    %248 = vmatpush.bf16.msra.mxu0 0
    %249 = vmatpush.bf16.msra.mxu0 0
    %250 = vmatpush.bf16.msra.mxu0 0
    %251 = vmatpush.bf16.msra.mxu0 0
    %252 = vmatpush.bf16.msra.mxu0 0
    %253 = vmatpush.bf16.msra.mxu0 0
    %254 = vmatpush.bf16.msra.mxu0 %v85
    %255 = vmatmul.bf16.gmra.mxu0 %v245
    %v256 = vpop.f32.mrf.mxu0
    %v257 = vadd.f32 %v232, %v256
    %v258 = vpop.f32.mrf.mxu0
    %v259 = vadd.f32 %v237, %v258
    %260 = vdwg.mxu0
    %261 = vmatpush.bf16.msra.mxu0 0
    %262 = vmatpush.bf16.msra.mxu0 0
    %263 = vmatpush.bf16.msra.mxu0 0
    %264 = vmatpush.bf16.msra.mxu0 0
    %265 = vmatpush.bf16.msra.mxu0 0
    %266 = vmatpush.bf16.msra.mxu0 0
    %267 = vmatpush.bf16.msra.mxu0 0
    %268 = vmatpush.bf16.msra.mxu0 %v86
    %269 = vmatmul.bf16.gmra.mxu0 %v245
    %v270 = vpop.f32.mrf.mxu0
    %v271 = vadd.f32 %v232, %v270
    %v272 = vpop.f32.mrf.mxu0
    %v273 = vadd.f32 %v237, %v272
    %274 = vdwg.mxu0
    %v275 = vadd.f32 %v257, %v211
    %v276 = vadd.f32 %v271, %v225
    %v277 = vadd.f32 %v259, %v213
    %v278 = vadd.f32 %v273, %v227
    %v279 = vmax.f32 %v275, 0.0
    %v280 = vmax.f32 %v276, 0.0
    %v281 = vmax.f32 %v277, 0.0
    %v282 = vmax.f32 %v278, 0.0
    %v283 = vpack.c.bf16 %v280, %v279
    %v284 = vpack.c.bf16 %v282, %v281
    %285 = vst [vmem:[#allocation7] sm:$0xff] %v283
    %286 = vst [vmem:[#allocation7 + $0x8] sm:$0xff] %v284
    %s287 = scalar_lea.vmem %s0, 16
    %v288 = vld [vmem:[%s287] sm:$0xff]
    %v289 = vld [vmem:[%s287 + $0x8] sm:$0xff]
    %v292 = vunpack.c.l.b16 %v288
    %v293 = vunpack.c.h.b16 %v288
    %v294 = vunpack.c.l.b16 %v289
    %v295 = vunpack.c.h.b16 %v289
    %v296 = vpack.c.b16 %v294, %v292
    %v297 = vpack.c.b16 %v295, %v293
    %300 = vmatpush.bf16.msra.mxu0 0
    %301 = vmatpush.bf16.msra.mxu0 0
    %302 = vmatpush.bf16.msra.mxu0 0
    %303 = vmatpush.bf16.msra.mxu0 0
    %304 = vmatpush.bf16.msra.mxu0 0
    %305 = vmatpush.bf16.msra.mxu0 0
    %306 = vmatpush.bf16.msra.mxu0 0
    %307 = vmatpush.bf16.msra.mxu0 %v296
    %308 = vmatmul.bf16.gmra.mxu0 %v91
    %v309 = vpop.f32.mrf.mxu0
    %v310 = vadd.f32 %v67, %v309
    %v311 = vpop.f32.mrf.mxu0
    %v312 = vadd.f32 %v72, %v311
    %313 = vdwg.mxu0
    %314 = vmatpush.bf16.msra.mxu0 0
    %315 = vmatpush.bf16.msra.mxu0 0
    %316 = vmatpush.bf16.msra.mxu0 0
    %317 = vmatpush.bf16.msra.mxu0 0
    %318 = vmatpush.bf16.msra.mxu0 0
    %319 = vmatpush.bf16.msra.mxu0 0
    %320 = vmatpush.bf16.msra.mxu0 0
    %321 = vmatpush.bf16.msra.mxu0 %v297
    %322 = vmatmul.bf16.gmra.mxu0 %v91
    %v323 = vpop.f32.mrf.mxu0
    %v324 = vadd.f32 %v67, %v323
    %v325 = vpop.f32.mrf.mxu0
    %v326 = vadd.f32 %v72, %v325
    %327 = vdwg.mxu0
    %v328 = vmax.f32 %v310, %v312
    %v329 = vrot.slane %v328, 4
    %v330 = vmax.f32 %v328, %v329
    %v331 = vrot.slane %v330, 2
    %v332 = vmax.f32 %v330, %v331
    %v333 = vrot.slane %v332, 1
    %v334 = vmax.f32 %v332, %v333
    %v335 = vmax.f32 %v324, %v326
    %v336 = vrot.slane %v335, 4
    %v337 = vmax.f32 %v335, %v336
    %v338 = vrot.slane %v337, 2
    %v339 = vmax.f32 %v337, %v338
    %v340 = vrot.slane %v339, 1
    %v341 = vmax.f32 %v339, %v340
    %v342 = vsub.f32 %v310, %v334
    %v343 = vsub.f32 %v324, %v341
    %v344 = vsub.f32 %v312, %v334
    %v345 = vsub.f32 %v326, %v341
    %v346 = vmul.f32 %v342, 1.442695
    %v347 = vpow.pop %v346
    %v348 = vmul.f32 %v343, 1.442695
    %v349 = vpow.pop %v348
    %v350 = vmul.f32 %v344, 1.442695
    %v351 = vpow.pop %v350
    %v352 = vmul.f32 %v345, 1.442695
    %v353 = vpow.pop %v352
    %v354 = vadd.f32 %v347, %v351
    %v355 = vrot.slane %v354, 4
    %v356 = vadd.f32 %v354, %v355
    %v357 = vrot.slane %v356, 2
    %v358 = vadd.f32 %v356, %v357
    %v359 = vrot.slane %v358, 1
    %v360 = vadd.f32 %v358, %v359
    %v361 = vadd.f32 %v349, %v353
    %v362 = vrot.slane %v361, 4
    %v363 = vadd.f32 %v361, %v362
    %v364 = vrot.slane %v363, 2
    %v365 = vadd.f32 %v363, %v364
    %v366 = vrot.slane %v365, 1
    %v367 = vadd.f32 %v365, %v366
    %v368 = vrcp.pop %v360
    %v369 = vrcp.pop %v367
    %v370 = vmul.f32 %v347, %v368
    %v371 = vmul.f32 %v349, %v369
    %v372 = vmul.f32 %v351, %v368
    %v373 = vmul.f32 %v353, %v369
    %v374 = vpack.c.bf16 %v372, %v370
    %v375 = vpack.c.bf16 %v373, %v371
    %376 = vmatpush.bf16.xpose.msra.mxu0 0
    %377 = vmatpush.bf16.xpose.msra.mxu0 0
    %378 = vmatpush.bf16.xpose.msra.mxu0 0
    %379 = vmatpush.bf16.xpose.msra.mxu0 0
    %380 = vmatpush.bf16.xpose.msra.mxu0 0
    %381 = vmatpush.bf16.xpose.msra.mxu0 0
    %382 = vmatpush.bf16.xpose.msra.mxu0 0
    %383 = vmatpush.bf16.xpose.msra.mxu0 %v374
    %384 = vmatmul.bf16.gmra.mxu0 %v296
    %v385 = vpop.f32.mrf.mxu0
    %v386 = vadd.f32 0.0, %v385
    %v387 = vpop.f32.mrf.mxu0
    %v388 = vadd.f32 0.0, %v387
    %389 = vdwg.mxu0
    %390 = vmatpush.bf16.xpose.msra.mxu0 0
    %391 = vmatpush.bf16.xpose.msra.mxu0 0
    %392 = vmatpush.bf16.xpose.msra.mxu0 0
    %393 = vmatpush.bf16.xpose.msra.mxu0 0
    %394 = vmatpush.bf16.xpose.msra.mxu0 0
    %395 = vmatpush.bf16.xpose.msra.mxu0 0
    %396 = vmatpush.bf16.xpose.msra.mxu0 0
    %397 = vmatpush.bf16.xpose.msra.mxu0 %v375
    %398 = vmatmul.bf16.gmra.mxu0 %v297
    %v399 = vpop.f32.mrf.mxu0
    %v400 = vadd.f32 %v386, %v399
    %v401 = vpop.f32.mrf.mxu0
    %v402 = vadd.f32 %v388, %v401
    %403 = vdwg.mxu0
    %v404 = vpack.c.bf16 %v402, %v400
    %v406 = vsel %vm89, %v404, 0
    %408 = vmatpush.bf16.msra.mxu0 0
    %409 = vmatpush.bf16.msra.mxu0 0
    %410 = vmatpush.bf16.msra.mxu0 0
    %411 = vmatpush.bf16.msra.mxu0 0
    %412 = vmatpush.bf16.msra.mxu0 0
    %413 = vmatpush.bf16.msra.mxu0 0
    %414 = vmatpush.bf16.msra.mxu0 0
    %415 = vmatpush.bf16.msra.mxu0 %v374
    %416 = vmatmul.bf16.gmra.mxu0 %v406
    %v417 = vpop.f32.mrf.mxu0
    %v418 = vadd.f32 0.0, %v417
    %v419 = vpop.f32.mrf.mxu0
    %v420 = vadd.f32 0.0, %v419
    %421 = vdwg.mxu0
    %422 = vmatpush.bf16.msra.mxu0 0
    %423 = vmatpush.bf16.msra.mxu0 0
    %424 = vmatpush.bf16.msra.mxu0 0
    %425 = vmatpush.bf16.msra.mxu0 0
    %426 = vmatpush.bf16.msra.mxu0 0
    %427 = vmatpush.bf16.msra.mxu0 0
    %428 = vmatpush.bf16.msra.mxu0 0
    %429 = vmatpush.bf16.msra.mxu0 %v375
    %430 = vmatmul.bf16.gmra.mxu0 %v406
    %v431 = vpop.f32.mrf.mxu0
    %v432 = vadd.f32 0.0, %v431
    %v433 = vpop.f32.mrf.mxu0
    %v434 = vadd.f32 0.0, %v433
    %435 = vdwg.mxu0
    %436 = vmatpush.bf16.msra.mxu0 0
    %437 = vmatpush.bf16.msra.mxu0 0
    %438 = vmatpush.bf16.msra.mxu0 0
    %439 = vmatpush.bf16.msra.mxu0 0
    %440 = vmatpush.bf16.msra.mxu0 0
    %441 = vmatpush.bf16.msra.mxu0 0
    %442 = vmatpush.bf16.msra.mxu0 0
    %443 = vmatpush.bf16.msra.mxu0 %v296
    %444 = vmatmul.bf16.gmra.mxu0 %v245
    %v445 = vpop.f32.mrf.mxu0
    %v446 = vadd.f32 %v232, %v445
    %v447 = vpop.f32.mrf.mxu0
    %v448 = vadd.f32 %v237, %v447
    %449 = vdwg.mxu0
    %450 = vmatpush.bf16.msra.mxu0 0
    %451 = vmatpush.bf16.msra.mxu0 0
    %452 = vmatpush.bf16.msra.mxu0 0
    %453 = vmatpush.bf16.msra.mxu0 0
    %454 = vmatpush.bf16.msra.mxu0 0
    %455 = vmatpush.bf16.msra.mxu0 0
    %456 = vmatpush.bf16.msra.mxu0 0
    %457 = vmatpush.bf16.msra.mxu0 %v297
    %458 = vmatmul.bf16.gmra.mxu0 %v245
    %v459 = vpop.f32.mrf.mxu0
    %v460 = vadd.f32 %v232, %v459
    %v461 = vpop.f32.mrf.mxu0
    %v462 = vadd.f32 %v237, %v461
    %463 = vdwg.mxu0
    %v464 = vadd.f32 %v446, %v418
    %v465 = vadd.f32 %v460, %v432
    %v466 = vadd.f32 %v448, %v420
    %v467 = vadd.f32 %v462, %v434
    %v468 = vmax.f32 %v464, 0.0
    %v469 = vmax.f32 %v465, 0.0
    %v470 = vmax.f32 %v466, 0.0
    %v471 = vmax.f32 %v467, 0.0
    %v472 = vpack.c.bf16 %v469, %v468
    %v473 = vpack.c.bf16 %v471, %v470
    %s474 = scalar_lea.vmem [#allocation7], 16
    %475 = vst [vmem:[%s474] sm:$0xff] %v472
    %476 = vst [vmem:[%s474 + $0x8] sm:$0xff] %v473
    // Predicated region
    $region30: #{tpu_custom_call.1} parent=1 // pred_check
      _
    $region31: #{tpu_custom_call.1} parent=1 // pred_check_branch
      %478 = sbr.rel (0) target = $region33
    $region32: #{tpu_custom_call.1} parent=1 // pred_region
      %480 = vsyncadd [#allocation4], 0
      %s481 = sshll.u32 [#allocation7], 4
      %s482 = int_to_ptr.vmem [resolvable:$true] %s481
      %s483 = sshll.u32 %s5, 4
      %s484 = int_to_ptr.hbm [resolvable:$true] %s483
      %489 = dma.vmem_to_hbm [thread:$0]  %s482, 512, %s484, [#allocation4], 128, 128, 8
    $region33: #{tpu_custom_call.1} parent=1 // pred_fallthru
      _
    // Predicated region
    $region34: #{tpu_custom_call.1} parent=1 // pred_check
      _
    $region35: #{tpu_custom_call.1} parent=1 // pred_check_branch
      %491 = sbr.rel (0) target = $region37
    $region36: #{tpu_custom_call.1} parent=1 // pred_region
      %493 = dma.done [#allocation4], 512
    $region37: #{tpu_custom_call.1} parent=1 // pred_fallthru
      _
    %494 = vsyncpa [#allocation3], 1
    %495 = vsyncpa [#allocation6], 1
    %496 = vsyncpa [#allocation4], 1

</llo_original>
